<compile_context>
chip_gen: v7x
topology: tpu7x:2x2x1
jax: 0.10.0
libtpu: 0.0.40
codegen_flags: <defaults>
</compile_context>

<pallas_src>
import jax
import jax.numpy as jnp
from jax.experimental import pallas as pl
from jax.experimental.pallas import tpu as pltpu


def reward_model_kernel(x_ref, a_ref, w1_ref, b1_ref, w2_ref, b2_ref,
                        w3_ref, b3_ref, o_ref, xa_ref):
    obs_dim = x_ref.shape[-1]

    # Pack [x | a] into the VMEM scratch (two static masked lane-range stores)
    # so fc1 is a single MXU dot against the unsplit [D, 256] bf16 weight.
    xa_ref[:, :obs_dim] = x_ref[...]
    xa_ref[:, obs_dim:] = a_ref[...]

    # fc1: h1 = relu(xa @ w1 + b1)   (bf16 MXU operands, f32 accum/epilogue,
    # fused bias+ReLU+cast so no extra materialized f32 temp)
    h1 = jnp.maximum(
        jnp.dot(xa_ref[...].astype(jnp.bfloat16), w1_ref[...],
                preferred_element_type=jnp.float32) + b1_ref[...],
        0.0).astype(jnp.bfloat16)

    # fc2: h2 = relu(h1 @ w2 + b2)   (h2 stays f32 for the fc3 epilogue)
    h2 = jnp.maximum(
        jnp.dot(h1, w2_ref[...], preferred_element_type=jnp.float32)
        + b2_ref[...], 0.0)

    # fc3 (out_features == 1): VPU multiply + lane reduction instead of an
    # N=1 MXU matmul; w3 is a lane-dense [1, H] f32 row, b3 an SMEM scalar.
    o_ref[...] = (jnp.sum(h2 * w3_ref[...], axis=-1, keepdims=True)
                  + b3_ref[0, 0]).astype(o_ref.dtype)


def _round_up(x, m):
    return ((x + m - 1) // m) * m


def _pick_block_b(B):
    """Batch-tile size: >= 2 grid steps when the batch allows it (v7x has two
    TensorCores and the parallel batch axis is how work shards across them),
    rows a multiple of 8 (sublane granule), capped at 512 rows per tile."""
    if B <= 8:
        return B                      # single tile; block == full dim is legal
    return min(512, _round_up(pl.cdiv(B, 2), 8))


def reward_model_forward(x, a, kernel_params, *, block_b=None):
    """x: [B, obs_dim] f32, a: [B, act_dim] f32  ->  [B, 1] f32 reward."""
    w1, b1, w2, b2, w3, b3 = kernel_params
    B, obs_dim = x.shape
    act_dim = a.shape[1]
    D = obs_dim + act_dim
    H = w2.shape[0]

    block_b = _pick_block_b(B) if block_b is None else min(block_b, B)
    grid = (pl.cdiv(B, block_b),)

    cost = pl.CostEstimate(
        flops=2 * B * (D * H + H * H + H),
        transcendentals=0,
        bytes_accessed=(B * (D + 1) * 4            # activations in / reward out (f32)
                        + (D * H + H * H) * 2      # bf16 weights (VMEM-resident)
                        + (3 * H + 1) * 4))        # biases + w3 row (f32)

    resident = lambda shape: pl.BlockSpec(shape, lambda i: (0, 0))

    return pl.pallas_call(
        reward_model_kernel,
        out_shape=jax.ShapeDtypeStruct((B, 1), jnp.float32),
        grid=grid,
        in_specs=[
            pl.BlockSpec((block_b, obs_dim), lambda i: (i, 0)),   # x
            pl.BlockSpec((block_b, act_dim), lambda i: (i, 0)),   # a
            resident((D, H)),                                     # w1 (bf16)
            resident((1, H)),                                     # b1 (f32)
            resident((H, H)),                                     # w2 (bf16)
            resident((1, H)),                                     # b2 (f32)
            resident((1, H)),                                     # w3 row (f32)
            pl.BlockSpec(memory_space=pltpu.MemorySpace.SMEM),    # b3 scalar
        ],
        out_specs=pl.BlockSpec((block_b, 1), lambda i: (i, 0)),
        scratch_shapes=[pltpu.VMEM((block_b, D), jnp.float32)],   # [x | a] pack
        compiler_params=pltpu.CompilerParams(
            dimension_semantics=("parallel",),
            vmem_limit_bytes=32 << 20),
        cost_estimate=cost,
    )(x, a, w1, b1, w2, b2, w3, b3)


def init_params(key, obs_dim, act_dim, hidden=256):
    """PyTorch-Linear-like uniform init, stored as [in, out] / [1, out] f32."""
    d = obs_dim + act_dim
    ks = jax.random.split(key, 6)

    def lin(kw, kb, fan_in, fan_out):
        bound = 1.0 / jnp.sqrt(fan_in)
        w = jax.random.uniform(kw, (fan_in, fan_out), jnp.float32, -bound, bound)
        b = jax.random.uniform(kb, (1, fan_out), jnp.float32, -bound, bound)
        return w, b

    w1, b1 = lin(ks[0], ks[1], d, hidden)
    w2, b2 = lin(ks[2], ks[3], hidden, hidden)
    w3, b3 = lin(ks[4], ks[5], hidden, 1)
    return (w1, b1, w2, b2, w3, b3)


def prepare_kernel_params(params):
    """One-time host-side conversion to the kernel's layout: w1 kept unsplit
    as [D, H] bf16, w2 as [H, H] bf16, w3 as a lane-dense [1, H] f32 row,
    b3 as a (1, 1) f32 SMEM scalar."""
    w1, b1, w2, b2, w3, b3 = params
    return (w1.astype(jnp.bfloat16), b1,
            w2.astype(jnp.bfloat16), b2,
            w3.reshape(1, -1).astype(jnp.float32), b3)


def reference_forward(x, a, params):
    """Pure-JAX reference matching the PyTorch forward, using the same
    bf16-operand / f32-accumulate matmul numerics the kernel uses."""
    w1, b1, w2, b2, w3, b3 = params

    def qmm(h, w):
        return jnp.dot(h.astype(jnp.bfloat16), w.astype(jnp.bfloat16),
                       preferred_element_type=jnp.float32)

    h = jnp.concatenate([x, a], axis=1)
    h = jnp.maximum(qmm(h, w1) + b1, 0.0)
    h = jnp.maximum(qmm(h, w2) + b2, 0.0)
    return jnp.sum(h * w3.reshape(1, -1), axis=-1, keepdims=True) + b3


if __name__ == "__main__":
    key = jax.random.PRNGKey(0)
    k_x, k_a, k_p = jax.random.split(key, 3)

    batch, obs_dim, act_dim = 2, 17, 6   # small mujoco-like env shapes
    x = jax.random.normal(k_x, (batch, obs_dim), jnp.float32)
    a = jax.random.normal(k_a, (batch, act_dim), jnp.float32)
    params = init_params(k_p, obs_dim, act_dim, hidden=256)
    kparams = prepare_kernel_params(params)

    out = reward_model_forward(x, a, kparams)
    out = jax.block_until_ready(out)

    ref = reference_forward(x, a, params)
    assert out.shape == (batch, 1)
    assert jnp.allclose(out, ref, atol=1e-2, rtol=1e-2), (out, ref)

    print("KERNEL_OK")
</pallas_src>

<mosaic_0001>
module attributes {stable_mosaic.version = 11 : i64} {
  func.func @reward_model_kernel(%arg0: i32, %arg1: memref<2x17xf32, #tpu.memory_space<vmem>>, %arg2: memref<2x6xf32, #tpu.memory_space<vmem>>, %arg3: memref<23x256xbf16, #tpu.memory_space<vmem>>, %arg4: memref<1x256xf32, #tpu.memory_space<vmem>>, %arg5: memref<256x256xbf16, #tpu.memory_space<vmem>>, %arg6: memref<1x256xf32, #tpu.memory_space<vmem>>, %arg7: memref<1x256xf32, #tpu.memory_space<vmem>>, %arg8: memref<1x1xf32, #tpu.memory_space<smem>>, %arg9: memref<2x1xf32, #tpu.memory_space<vmem>>, %arg10: memref<2x23xf32, #tpu.memory_space<vmem>>) attributes {dimension_semantics = [#tpu.dimension_semantics<parallel>], iteration_bounds = array<i64: 1>, scalar_prefetch = 0 : i64, scratch_operands = 1 : i64, tpu.core_type = #tpu.core_type<tc>, window_params = [{transform_indices = @transform_0, window_bounds = array<i64: 2, 17>}, {transform_indices = @transform_1, window_bounds = array<i64: 2, 6>}, {pipeline_mode = #tpu.pipeline_mode<synchronous>, transform_indices = @transform_2, window_bounds = array<i64: 23, 256>}, {pipeline_mode = #tpu.pipeline_mode<synchronous>, transform_indices = @transform_3, window_bounds = array<i64: 1, 256>}, {pipeline_mode = #tpu.pipeline_mode<synchronous>, transform_indices = @transform_4, window_bounds = array<i64: 256, 256>}, {pipeline_mode = #tpu.pipeline_mode<synchronous>, transform_indices = @transform_5, window_bounds = array<i64: 1, 256>}, {pipeline_mode = #tpu.pipeline_mode<synchronous>, transform_indices = @transform_6, window_bounds = array<i64: 1, 256>}, {transform_indices = @transform_7, window_bounds = array<i64: 1, 1>}, {transform_indices = @transform_8, window_bounds = array<i64: 2, 1>}]} {
    %c0 = arith.constant 0 : index
    %c0_0 = arith.constant 0 : index
    %0 = vector.load %arg1[%c0, %c0_0] : memref<2x17xf32, #tpu.memory_space<vmem>>, vector<2x17xf32>
    %c0_1 = arith.constant 0 : index
    %c0_2 = arith.constant 0 : index
    %1 = vector.load %arg10[%c0_1, %c0_2] : memref<2x23xf32, #tpu.memory_space<vmem>>, vector<2x17xf32>
    tpu.vector_store %arg10[%c0_1, %c0_2], %0 {strides = array<i32>} : memref<2x23xf32, #tpu.memory_space<vmem>>, vector<2x17xf32>,
    %c0_3 = arith.constant 0 : index
    %c0_4 = arith.constant 0 : index
    %2 = vector.load %arg2[%c0_3, %c0_4] : memref<2x6xf32, #tpu.memory_space<vmem>>, vector<2x6xf32>
    %c0_5 = arith.constant 0 : index
    %c17 = arith.constant 17 : index
    %3 = vector.load %arg10[%c0_5, %c17] : memref<2x23xf32, #tpu.memory_space<vmem>>, vector<2x6xf32>
    tpu.vector_store %arg10[%c0_5, %c17], %2 {strides = array<i32>} : memref<2x23xf32, #tpu.memory_space<vmem>>, vector<2x6xf32>,
    %c0_6 = arith.constant 0 : index
    %c0_7 = arith.constant 0 : index
    %4 = vector.load %arg10[%c0_6, %c0_7] : memref<2x23xf32, #tpu.memory_space<vmem>>, vector<2x23xf32>
    %5 = arith.truncf %4 : vector<2x23xf32> to vector<2x23xbf16>
    %c0_8 = arith.constant 0 : index
    %c0_9 = arith.constant 0 : index
    %6 = vector.load %arg3[%c0_8, %c0_9] : memref<23x256xbf16, #tpu.memory_space<vmem>>, vector<23x256xbf16>
    %cst = arith.constant dense<0.000000e+00> : vector<2x256xf32>
    %7 = tpu.matmul %5, %6, %cst {dimension_numbers = #tpu.dot_dimension_numbers<[1], [0], [0], [1], [0, 0, 1, 1], [], []>} : vector<2x23xbf16>, vector<23x256xbf16>, vector<2x256xf32> -> vector<2x256xf32>
    %c0_10 = arith.constant 0 : index
    %c0_11 = arith.constant 0 : index
    %8 = vector.load %arg4[%c0_10, %c0_11] : memref<1x256xf32, #tpu.memory_space<vmem>>, vector<1x256xf32>
    %9 = vector.broadcast %8 : vector<1x256xf32> to vector<2x256xf32>
    %10 = arith.addf %7, %9 : vector<2x256xf32>
    %cst_12 = arith.constant 0.000000e+00 : f32
    %11 = vector.broadcast %cst_12 : f32 to vector<2x256xf32>
    %12 = arith.maximumf %10, %11 : vector<2x256xf32>
    %13 = arith.truncf %12 : vector<2x256xf32> to vector<2x256xbf16>
    %c0_13 = arith.constant 0 : index
    %c0_14 = arith.constant 0 : index
    %14 = vector.load %arg5[%c0_13, %c0_14] : memref<256x256xbf16, #tpu.memory_space<vmem>>, vector<256x256xbf16>
    %cst_15 = arith.constant dense<0.000000e+00> : vector<2x256xf32>
    %15 = tpu.matmul %13, %14, %cst_15 {dimension_numbers = #tpu.dot_dimension_numbers<[1], [0], [0], [1], [0, 0, 1, 1], [], []>} : vector<2x256xbf16>, vector<256x256xbf16>, vector<2x256xf32> -> vector<2x256xf32>
    %c0_16 = arith.constant 0 : index
    %c0_17 = arith.constant 0 : index
    %16 = vector.load %arg6[%c0_16, %c0_17] : memref<1x256xf32, #tpu.memory_space<vmem>>, vector<1x256xf32>
    %17 = vector.broadcast %16 : vector<1x256xf32> to vector<2x256xf32>
    %18 = arith.addf %15, %17 : vector<2x256xf32>
    %cst_18 = arith.constant 0.000000e+00 : f32
    %19 = vector.broadcast %cst_18 : f32 to vector<2x256xf32>
    %20 = arith.maximumf %18, %19 : vector<2x256xf32>
    %c0_19 = arith.constant 0 : index
    %c0_20 = arith.constant 0 : index
    %21 = vector.load %arg7[%c0_19, %c0_20] : memref<1x256xf32, #tpu.memory_space<vmem>>, vector<1x256xf32>
    %22 = vector.broadcast %21 : vector<1x256xf32> to vector<2x256xf32>
    %23 = arith.mulf %20, %22 : vector<2x256xf32>
    %cst_21 = arith.constant dense<0.000000e+00> : vector<2xf32>
    %24 = vector.multi_reduction <add>, %23, %cst_21 [1] : vector<2x256xf32> to vector<2xf32>
    %25 = vector.shape_cast %24 : vector<2xf32> to vector<2x1xf32>
    %c0_22 = arith.constant 0 : index
    %c0_23 = arith.constant 0 : index
    %26 = memref.load %arg8[%c0_22, %c0_23] : memref<1x1xf32, #tpu.memory_space<smem>>
    %27 = vector.broadcast %26 : f32 to vector<2x1xf32>
    %28 = arith.addf %25, %27 : vector<2x1xf32>
    %c0_24 = arith.constant 0 : index
    %c0_25 = arith.constant 0 : index
    %29 = vector.load %arg9[%c0_24, %c0_25] : memref<2x1xf32, #tpu.memory_space<vmem>>, vector<2x1xf32>
    tpu.vector_store %arg9[%c0_24, %c0_25], %28 {strides = array<i32>} : memref<2x1xf32, #tpu.memory_space<vmem>>, vector<2x1xf32>,
    return
  }
  func.func @transform_0(%arg0: i32) -> (i32, i32) {
    %c0_i32 = arith.constant 0 : i32
    %c0_i32_0 = arith.constant 0 : i32
    return %arg0, %c0_i32 : i32, i32
  }
  func.func @transform_1(%arg0: i32) -> (i32, i32) {
    %c0_i32 = arith.constant 0 : i32
    %c0_i32_0 = arith.constant 0 : i32
    return %arg0, %c0_i32 : i32, i32
  }
  func.func @transform_2(%arg0: i32) -> (i32, i32) {
    %c0_i32 = arith.constant 0 : i32
    %c0_i32_0 = arith.constant 0 : i32
    %c0_i32_1 = arith.constant 0 : i32
    return %c0_i32, %c0_i32_0 : i32, i32
  }
  func.func @transform_3(%arg0: i32) -> (i32, i32) {
    %c0_i32 = arith.constant 0 : i32
    %c0_i32_0 = arith.constant 0 : i32
    %c0_i32_1 = arith.constant 0 : i32
    return %c0_i32, %c0_i32_0 : i32, i32
  }
  func.func @transform_4(%arg0: i32) -> (i32, i32) {
    %c0_i32 = arith.constant 0 : i32
    %c0_i32_0 = arith.constant 0 : i32
    %c0_i32_1 = arith.constant 0 : i32
    return %c0_i32, %c0_i32_0 : i32, i32
  }
  func.func @transform_5(%arg0: i32) -> (i32, i32) {
    %c0_i32 = arith.constant 0 : i32
    %c0_i32_0 = arith.constant 0 : i32
    %c0_i32_1 = arith.constant 0 : i32
    return %c0_i32, %c0_i32_0 : i32, i32
  }
  func.func @transform_6(%arg0: i32) -> (i32, i32) {
    %c0_i32 = arith.constant 0 : i32
    %c0_i32_0 = arith.constant 0 : i32
    %c0_i32_1 = arith.constant 0 : i32
    return %c0_i32, %c0_i32_0 : i32, i32
  }
  func.func @transform_7(%arg0: i32) -> (i32, i32) {
    %c0_i32 = arith.constant 0 : i32
    %c0_i32_0 = arith.constant 0 : i32
    %c0_i32_1 = arith.constant 0 : i32
    return %c0_i32, %c0_i32_0 : i32, i32
  }
  func.func @transform_8(%arg0: i32) -> (i32, i32) {
    %c0_i32 = arith.constant 0 : i32
    %c0_i32_0 = arith.constant 0 : i32
    return %arg0, %c0_i32 : i32, i32
  }
}

</mosaic_0001>

<llo_original>
// kernel: tpu_custom_call.1
$region0: #{tpu_custom_call.1}
  #allocation0 [shape = 'u32[]', space=smem, size = 0x4, offset = 0x4, fixed_abs, tag = 'smem constant byte address 0x4 - core index']
  #allocation1 [shape = 'u32[144,128]{1,0:T(1,128)}', space=vmem, size = 0x12000, scoped, tag = 'internal scratch']
  #allocation2 [shape = 'f32[2,23]{1,0:T(2,128)}', space=vmem, size = 0x400, scoped, tag = 'scratch operand']
  #allocation3 [shape = 'f32[1,1]{1,0:T(1,128)S(6)}', space=smem, size = 0x200, scoped, tag = 'scoped memory for tpu_custom_call.1']
  %s0 = inlined_call_operand.vmem [shape: f32[2,17], index: 0, kind: input, shape index: {}]
  %s1 = inlined_call_operand.vmem [shape: f32[2,6], index: 1, kind: input, shape index: {}]
  %s2 = inlined_call_operand.hbm [shape: bf16[23,256], index: 2, kind: input, shape index: {}]
  %s3 = inlined_call_operand.vmem [shape: f32[1,256], index: 3, kind: input, shape index: {}]
  %s4 = inlined_call_operand.hbm [shape: bf16[256,256], index: 4, kind: input, shape index: {}]
  %s5 = inlined_call_operand.vmem [shape: f32[1,256], index: 5, kind: input, shape index: {}]
  %s6 = inlined_call_operand.vmem [shape: f32[1,256], index: 6, kind: input, shape index: {}]
  %s7 = inlined_call_operand.<no memory space> [shape: f32[1,1], index: 7, kind: input, shape index: {}]
  %s8 = inlined_call_operand.vmem [shape: f32[2,1], index: 8, kind: output, shape index: {}]
  %s9 = sld [smem:[#allocation0]]
  $region50: #{tpu_custom_call.1} parent=0
    _
  %s11 = ssub.s32 1, %s9
  %s12 = scalar_select 0, %s11, %s9
  %13 = sst [smem:[#allocation3]] %s7
  $region1: #{tpu_custom_call.1} parent=0
    #allocation4 [shape = 'u8[12288]{0}', space=vmem, size = 0x3000, scoped, tag = 'input window, operand 2, single buffered']
    #allocation5 [shape = 's32[1]{0}', space=sflag, size = 0x4, scoped, tag = 'scoped memory for tpu_custom_call.1']
    #allocation6 [shape = 'u8[131072]{0}', space=vmem, size = 0x20000, scoped, tag = 'input window, operand 4, single buffered']
    #allocation7 [shape = 's32[1]{0}', space=sflag, size = 0x4, scoped, tag = 'scoped memory for tpu_custom_call.1']
    %14 = vsyncpa [#allocation5], 0
    %15 = vsyncpa [#allocation7], 0
    // Predicated region
    $region2: #{tpu_custom_call.1} parent=1 // pred_check
      _
    $region3: #{tpu_custom_call.1} parent=1 // pred_check_branch
      %17 = sbr.rel (0) target = $region5
    $region4: #{tpu_custom_call.1} parent=1 // pred_region
      _
    $region5: #{tpu_custom_call.1} parent=1 // pred_fallthru
      _
    // Predicated region
    $region6: #{tpu_custom_call.1} parent=1 // pred_check
      _
    $region7: #{tpu_custom_call.1} parent=1 // pred_check_branch
      %19 = sbr.rel (0) target = $region9
    $region8: #{tpu_custom_call.1} parent=1 // pred_region
      _
    $region9: #{tpu_custom_call.1} parent=1 // pred_fallthru
      _
    // Predicated region
    $region10: #{tpu_custom_call.1} parent=1 // pred_check
      _
    $region11: #{tpu_custom_call.1} parent=1 // pred_check_branch
      %21 = sbr.rel (0) target = $region13
    $region12: #{tpu_custom_call.1} parent=1 // pred_region
      %s23 = ssub.s32 384, 384
      %24 = vsyncadd [#allocation5], %s23
      %s25 = sshll.u32 [#allocation4], 4
      %s26 = int_to_ptr.vmem [resolvable:$true] %s25
      %31 = dma.hbm_to_vmem [thread:$0]  %s2, 384, %s26, [#allocation5], 128, 128, 8
    $region13: #{tpu_custom_call.1} parent=1 // pred_fallthru
      _
    // Predicated region
    $region14: #{tpu_custom_call.1} parent=1 // pred_check
      _
    $region15: #{tpu_custom_call.1} parent=1 // pred_check_branch
      %33 = sbr.rel (0) target = $region17
    $region16: #{tpu_custom_call.1} parent=1 // pred_region
      _
    $region17: #{tpu_custom_call.1} parent=1 // pred_fallthru
      _
    // Predicated region
    $region18: #{tpu_custom_call.1} parent=1 // pred_check
      _
    $region19: #{tpu_custom_call.1} parent=1 // pred_check_branch
      %35 = sbr.rel (0) target = $region21
    $region20: #{tpu_custom_call.1} parent=1 // pred_region
      %s37 = ssub.s32 4096, 4096
      %38 = vsyncadd [#allocation7], %s37
      %s39 = sshll.u32 [#allocation6], 4
      %s40 = int_to_ptr.vmem [resolvable:$true] %s39
      %45 = dma.hbm_to_vmem [thread:$0]  %s4, 4096, %s40, [#allocation7], 128, 128, 8
    $region21: #{tpu_custom_call.1} parent=1 // pred_fallthru
      _
    // Predicated region
    $region22: #{tpu_custom_call.1} parent=1 // pred_check
      _
    $region23: #{tpu_custom_call.1} parent=1 // pred_check_branch
      %47 = sbr.rel (0) target = $region25
    $region24: #{tpu_custom_call.1} parent=1 // pred_region
      _
    $region25: #{tpu_custom_call.1} parent=1 // pred_fallthru
      _
    // Predicated region
    $region26: #{tpu_custom_call.1} parent=1 // pred_check
      _
    $region27: #{tpu_custom_call.1} parent=1 // pred_check_branch
      %49 = sbr.rel (0) target = $region29
    $region28: #{tpu_custom_call.1} parent=1 // pred_region
      _
    $region29: #{tpu_custom_call.1} parent=1 // pred_fallthru
      _
    // Predicated region
    $region30: #{tpu_custom_call.1} parent=1 // pred_check
      _
    $region31: #{tpu_custom_call.1} parent=1 // pred_check_branch
      %51 = sbr.rel (0) target = $region33
    $region32: #{tpu_custom_call.1} parent=1 // pred_region
      _
    $region33: #{tpu_custom_call.1} parent=1 // pred_fallthru
      _
    // Predicated region
    $region34: #{tpu_custom_call.1} parent=1 // pred_check
      _
    $region35: #{tpu_custom_call.1} parent=1 // pred_check_branch
      %53 = sbr.rel (0) target = $region37
    $region36: #{tpu_custom_call.1} parent=1 // pred_region
      %54 = dma.done [#allocation5], 384
    $region37: #{tpu_custom_call.1} parent=1 // pred_fallthru
      _
    // Predicated region
    $region38: #{tpu_custom_call.1} parent=1 // pred_check
      _
    $region39: #{tpu_custom_call.1} parent=1 // pred_check_branch
      %56 = sbr.rel (0) target = $region41
    $region40: #{tpu_custom_call.1} parent=1 // pred_region
      %57 = dma.done [#allocation7], 4096
    $region41: #{tpu_custom_call.1} parent=1 // pred_fallthru
      _
    %v59 = vld [vmem:[%s0] sm:$0x3]
    %vm60 = vcmask 132096
    %61 = vst.msk [vmem:[#allocation2] sm:$0x3] %vm60, %v59
    %v62 = vld [vmem:[%s1] sm:$0x3]
    %64 = vrot.lane.b32.xlu0 %v62, 17
    %v65 = vpop.permute.xlu0 %64
    %vm67 = vcmask 181384
    %68 = vst.msk [vmem:[#allocation2] sm:$0x3] %vm67, %v65
    %v69 = vld [vmem:[#allocation2] sm:$0x3]
    %v70 = vpack.c.bf16 %v69, %v69
    %v71 = vld [vmem:[#allocation4] sm:$0xff]
    %v72 = vld [vmem:[#allocation4 + $0x8] sm:$0xff]
    %v73 = vld [vmem:[#allocation4 + $0x10] sm:$0xff]
    %v74 = vld [vmem:[%s3] sm:$0x3]
    %v76 = vlaneseq
    %v77 = vshrl.u32 %v76, 7
    %v78 = vsub.s32 0, %v77
    %v79 = vrot.slane %v74, %v78
    %v80 = vlaneseq
    %v81 = vshrl.u32 %v80, 7
    %v82 = vsub.s32 1, %v81
    %v83 = vrot.slane %v74, %v82
    %v89 = vunpack.c.l.b16 %v71
    %v90 = vunpack.c.h.b16 %v71
    %v91 = vunpack.c.l.b16 %v72
    %v92 = vunpack.c.h.b16 %v72
    %v93 = vunpack.c.l.b16 %v73
    %v94 = vunpack.c.h.b16 %v73
    %v95 = vpack.c.b16 %v91, %v89
    %v96 = vpack.c.b16 %v92, %v90
    %v97 = vpack.c.b16 %v93, %v93
    %v98 = vpack.c.b16 %v94, %v94
    %vm101 = vcmask 187392
    %v103 = vsel %vm101, %v70, 0
    %vm105 = vcmask 1042432
    %vm106 = vcmask 1043456
    %v107 = vsel %vm105, 4294967295, 65535
    %v108 = vsel %vm106, %v107, 0
    %v110 = vand.u32 %v97, %v108
    %v113 = vand.u32 %v98, %v108
    %115 = vmatprep.subr.bf16.mxu0 %v96
    %116 = vmatpush1.bf16.msra.mxu0 %v95
    %117 = vmatprep.subr.bf16.mxu0 %v113
    %118 = vmatpush1.bf16.msra.mxu0 %v110
    %119 = vmatprep.subr.bf16.mxu0 0
    %120 = vmatpush1.bf16.msra.mxu0 0
    %121 = vmatprep.subr.bf16.mxu0 0
    %122 = vmatpush1.bf16.msra.mxu0 0
    %123 = vmatprep.subr.bf16.mxu0 0
    %124 = vmatpush1.bf16.msra.mxu0 0
    %125 = vmatprep.subr.bf16.mxu0 0
    %126 = vmatpush1.bf16.msra.mxu0 0
    %127 = vmatprep.subr.bf16.mxu0 0
    %128 = vmatpush1.bf16.msra.mxu0 0
    %129 = vmatprep.subr.bf16.mxu0 0
    %130 = vmatpush1.bf16.msra.mxu0 0
    %131 = vmatprep.subr.bf16.mxu0 0
    %132 = vmatpush1.bf16.msra.mxu0 0
    %133 = vmatprep.subr.bf16.mxu0 0
    %134 = vmatpush1.bf16.msra.mxu0 0
    %135 = vmatprep.subr.bf16.mxu0 0
    %136 = vmatpush1.bf16.msra.mxu0 0
    %137 = vmatprep.subr.bf16.mxu0 0
    %138 = vmatpush1.bf16.msra.mxu0 0
    %139 = vmatprep.subr.bf16.mxu0 0
    %140 = vmatpush1.bf16.msra.mxu0 0
    %141 = vmatprep.subr.bf16.mxu0 0
    %142 = vmatpush1.bf16.msra.mxu0 0
    %143 = vmatprep.subr.bf16.mxu0 0
    %144 = vmatpush1.bf16.msra.mxu0 0
    %145 = vmatprep.subr.bf16.mxu0 0
    %146 = vmatpush1.bf16.msra.mxu0 0
    %147 = vmatprep.mubr.bf16.mxu0 0
    %148 = vmatmul.mubr.bf16.gmra.mrb[0].mxu0 %v103
    %v149 = vpop.f32.mrb[0].mxu0
    %v150 = vadd.f32 %v79, %v149
    %v151 = vpop.f32.mrb[0].mxu0
    %v152 = vadd.f32 %v83, %v151
    %v153 = vpop.f32.mrb[0].mxu0
    %v154 = vpop.f32.mrb[0].mxu0
    %155 = vdwg.mxu0
    %v156 = vmax.f32 %v150, 0.0
    %v157 = vmax.f32 %v152, 0.0
    %v158 = vpack.c.bf16 %v156, %v156
    %v159 = vpack.c.bf16 %v157, %v157
    %v160 = vld [vmem:[#allocation6] sm:$0xff]
    %v161 = vld [vmem:[#allocation6 + $0x8] sm:$0xff]
    %v162 = vld [vmem:[#allocation6 + $0x10] sm:$0xff]
    %v163 = vld [vmem:[#allocation6 + $0x18] sm:$0xff]
    %v164 = vld [vmem:[#allocation6 + $0x20] sm:$0xff]
    %v165 = vld [vmem:[#allocation6 + $0x28] sm:$0xff]
    %v166 = vld [vmem:[#allocation6 + $0x30] sm:$0xff]
    %v167 = vld [vmem:[#allocation6 + $0x38] sm:$0xff]
    %v168 = vld [vmem:[#allocation6 + $0x40] sm:$0xff]
    %v169 = vld [vmem:[#allocation6 + $0x48] sm:$0xff]
    %v170 = vld [vmem:[#allocation6 + $0x50] sm:$0xff]
    %v171 = vld [vmem:[#allocation6 + $0x58] sm:$0xff]
    %v172 = vld [vmem:[#allocation6 + $0x60] sm:$0xff]
    %v173 = vld [vmem:[#allocation6 + $0x68] sm:$0xff]
    %v174 = vld [vmem:[#allocation6 + $0x70] sm:$0xff]
    %v175 = vld [vmem:[#allocation6 + $0x78] sm:$0xff]
    %v176 = vld [vmem:[#allocation6 + $0x80] sm:$0xff]
    %v177 = vld [vmem:[#allocation6 + $0x88] sm:$0xff]
    %v178 = vld [vmem:[#allocation6 + $0x90] sm:$0xff]
    %v179 = vld [vmem:[#allocation6 + $0x98] sm:$0xff]
    %v180 = vld [vmem:[#allocation6 + $0xa0] sm:$0xff]
    %v181 = vld [vmem:[#allocation6 + $0xa8] sm:$0xff]
    %v182 = vld [vmem:[#allocation6 + $0xb0] sm:$0xff]
    %v183 = vld [vmem:[#allocation6 + $0xb8] sm:$0xff]
    %v184 = vld [vmem:[#allocation6 + $0xc0] sm:$0xff]
    %v185 = vld [vmem:[#allocation6 + $0xc8] sm:$0xff]
    %v186 = vld [vmem:[#allocation6 + $0xd0] sm:$0xff]
    %v187 = vld [vmem:[#allocation6 + $0xd8] sm:$0xff]
    %v188 = vld [vmem:[#allocation6 + $0xe0] sm:$0xff]
    %v189 = vld [vmem:[#allocation6 + $0xe8] sm:$0xff]
    %v190 = vld [vmem:[#allocation6 + $0xf0] sm:$0xff]
    %v191 = vld [vmem:[#allocation6 + $0xf8] sm:$0xff]
    %v192 = vld [vmem:[%s5] sm:$0x3]
    %v194 = vlaneseq
    %v195 = vshrl.u32 %v194, 7
    %v196 = vsub.s32 0, %v195
    %v197 = vrot.slane %v192, %v196
    %v198 = vlaneseq
    %v199 = vshrl.u32 %v198, 7
    %v200 = vsub.s32 1, %v199
    %v201 = vrot.slane %v192, %v200
    %v236 = vunpack.c.l.b16 %v160
    %v237 = vunpack.c.h.b16 %v160
    %v238 = vunpack.c.l.b16 %v161
    %v239 = vunpack.c.h.b16 %v161
    %v240 = vunpack.c.l.b16 %v162
    %v241 = vunpack.c.h.b16 %v162
    %v242 = vunpack.c.l.b16 %v163
    %v243 = vunpack.c.h.b16 %v163
    %v244 = vunpack.c.l.b16 %v164
    %v245 = vunpack.c.h.b16 %v164
    %v246 = vunpack.c.l.b16 %v165
    %v247 = vunpack.c.h.b16 %v165
    %v248 = vunpack.c.l.b16 %v166
    %v249 = vunpack.c.h.b16 %v166
    %v250 = vunpack.c.l.b16 %v167
    %v251 = vunpack.c.h.b16 %v167
    %v252 = vunpack.c.l.b16 %v168
    %v253 = vunpack.c.h.b16 %v168
    %v254 = vunpack.c.l.b16 %v169
    %v255 = vunpack.c.h.b16 %v169
    %v256 = vunpack.c.l.b16 %v170
    %v257 = vunpack.c.h.b16 %v170
    %v258 = vunpack.c.l.b16 %v171
    %v259 = vunpack.c.h.b16 %v171
    %v260 = vunpack.c.l.b16 %v172
    %v261 = vunpack.c.h.b16 %v172
    %v262 = vunpack.c.l.b16 %v173
    %v263 = vunpack.c.h.b16 %v173
    %v264 = vunpack.c.l.b16 %v174
    %v265 = vunpack.c.h.b16 %v174
    %v266 = vunpack.c.l.b16 %v175
    %v267 = vunpack.c.h.b16 %v175
    %v268 = vunpack.c.l.b16 %v176
    %v269 = vunpack.c.h.b16 %v176
    %v270 = vunpack.c.l.b16 %v177
    %v271 = vunpack.c.h.b16 %v177
    %v272 = vunpack.c.l.b16 %v178
    %v273 = vunpack.c.h.b16 %v178
    %v274 = vunpack.c.l.b16 %v179
    %v275 = vunpack.c.h.b16 %v179
    %v276 = vunpack.c.l.b16 %v180
    %v277 = vunpack.c.h.b16 %v180
    %v278 = vunpack.c.l.b16 %v181
    %v279 = vunpack.c.h.b16 %v181
    %v280 = vunpack.c.l.b16 %v182
    %v281 = vunpack.c.h.b16 %v182
    %v282 = vunpack.c.l.b16 %v183
    %v283 = vunpack.c.h.b16 %v183
    %v284 = vunpack.c.l.b16 %v184
    %v285 = vunpack.c.h.b16 %v184
    %v286 = vunpack.c.l.b16 %v185
    %v287 = vunpack.c.h.b16 %v185
    %v288 = vunpack.c.l.b16 %v186
    %v289 = vunpack.c.h.b16 %v186
    %v290 = vunpack.c.l.b16 %v187
    %v291 = vunpack.c.h.b16 %v187
    %v292 = vunpack.c.l.b16 %v188
    %v293 = vunpack.c.h.b16 %v188
    %v294 = vunpack.c.l.b16 %v189
    %v295 = vunpack.c.h.b16 %v189
    %v296 = vunpack.c.l.b16 %v190
    %v297 = vunpack.c.h.b16 %v190
    %v298 = vunpack.c.l.b16 %v191
    %v299 = vunpack.c.h.b16 %v191
    %v300 = vpack.c.b16 %v238, %v236
    %v301 = vpack.c.b16 %v239, %v237
    %v302 = vpack.c.b16 %v242, %v240
    %v303 = vpack.c.b16 %v243, %v241
    %v304 = vpack.c.b16 %v246, %v244
    %v305 = vpack.c.b16 %v247, %v245
    %v306 = vpack.c.b16 %v250, %v248
    %v307 = vpack.c.b16 %v251, %v249
    %v308 = vpack.c.b16 %v254, %v252
    %v309 = vpack.c.b16 %v255, %v253
    %v310 = vpack.c.b16 %v258, %v256
    %v311 = vpack.c.b16 %v259, %v257
    %v312 = vpack.c.b16 %v262, %v260
    %v313 = vpack.c.b16 %v263, %v261
    %v314 = vpack.c.b16 %v266, %v264
    %v315 = vpack.c.b16 %v267, %v265
    %v316 = vpack.c.b16 %v270, %v268
    %v317 = vpack.c.b16 %v271, %v269
    %v318 = vpack.c.b16 %v274, %v272
    %v319 = vpack.c.b16 %v275, %v273
    %v320 = vpack.c.b16 %v278, %v276
    %v321 = vpack.c.b16 %v279, %v277
    %v322 = vpack.c.b16 %v282, %v280
    %v323 = vpack.c.b16 %v283, %v281
    %v324 = vpack.c.b16 %v286, %v284
    %v325 = vpack.c.b16 %v287, %v285
    %v326 = vpack.c.b16 %v290, %v288
    %v327 = vpack.c.b16 %v291, %v289
    %v328 = vpack.c.b16 %v294, %v292
    %v329 = vpack.c.b16 %v295, %v293
    %v330 = vpack.c.b16 %v298, %v296
    %v331 = vpack.c.b16 %v299, %v297
    %364 = vmatprep.subr.bf16.mxu0 %v301
    %365 = vmatpush1.bf16.msra.mxu0 %v300
    %366 = vmatprep.subr.bf16.mxu0 %v303
    %367 = vmatpush1.bf16.msra.mxu0 %v302
    %368 = vmatprep.subr.bf16.mxu0 %v305
    %369 = vmatpush1.bf16.msra.mxu0 %v304
    %370 = vmatprep.subr.bf16.mxu0 %v307
    %371 = vmatpush1.bf16.msra.mxu0 %v306
    %372 = vmatprep.subr.bf16.mxu0 %v309
    %373 = vmatpush1.bf16.msra.mxu0 %v308
    %374 = vmatprep.subr.bf16.mxu0 %v311
    %375 = vmatpush1.bf16.msra.mxu0 %v310
    %376 = vmatprep.subr.bf16.mxu0 %v313
    %377 = vmatpush1.bf16.msra.mxu0 %v312
    %378 = vmatprep.subr.bf16.mxu0 %v315
    %379 = vmatpush1.bf16.msra.mxu0 %v314
    %380 = vmatprep.subr.bf16.mxu0 %v317
    %381 = vmatpush1.bf16.msra.mxu0 %v316
    %382 = vmatprep.subr.bf16.mxu0 %v319
    %383 = vmatpush1.bf16.msra.mxu0 %v318
    %384 = vmatprep.subr.bf16.mxu0 %v321
    %385 = vmatpush1.bf16.msra.mxu0 %v320
    %386 = vmatprep.subr.bf16.mxu0 %v323
    %387 = vmatpush1.bf16.msra.mxu0 %v322
    %388 = vmatprep.subr.bf16.mxu0 %v325
    %389 = vmatpush1.bf16.msra.mxu0 %v324
    %390 = vmatprep.subr.bf16.mxu0 %v327
    %391 = vmatpush1.bf16.msra.mxu0 %v326
    %392 = vmatprep.subr.bf16.mxu0 %v329
    %393 = vmatpush1.bf16.msra.mxu0 %v328
    %394 = vmatprep.subr.bf16.mxu0 %v331
    %395 = vmatpush1.bf16.msra.mxu0 %v330
    %396 = vmatprep.mubr.bf16.mxu0 %v159
    %397 = vmatmul.mubr.bf16.gmra.mrb[0].mxu0 %v158
    %v398 = vpop.f32.mrb[0].mxu0
    %v399 = vadd.f32 %v197, %v398
    %v400 = vpop.f32.mrb[0].mxu0
    %v401 = vadd.f32 %v201, %v400
    %v402 = vpop.f32.mrb[0].mxu0
    %v403 = vpop.f32.mrb[0].mxu0
    %404 = vdwg.mxu0
    %v405 = vmax.f32 %v399, 0.0
    %v406 = vmax.f32 %v401, 0.0
    %v407 = vld [vmem:[%s6] sm:$0x3]
    %v409 = vlaneseq
    %v410 = vshrl.u32 %v409, 7
    %v411 = vsub.s32 0, %v410
    %v412 = vrot.slane %v407, %v411
    %v413 = vlaneseq
    %v414 = vshrl.u32 %v413, 7
    %v415 = vsub.s32 1, %v414
    %v416 = vrot.slane %v407, %v415
    %v419 = vmul.f32 %v405, %v412
    %v420 = vmul.f32 %v406, %v416
    %vm421 = vcmask 1041408
    %v422 = vsel %vm421, %v419, 0.0
    %v423 = vsel %vm421, %v420, 0.0
    %v424 = vadd.f32 %v422, %v423
    %425 = vadd.xlane.f32.xlu0 %v424
    %v426 = vpop.xlane.xlu0 %425
    %s427 = sld [smem:[#allocation3]]
    %v428 = vstv %s427
    %v429 = vadd.f32 %v426, %v428
    %vm430 = vcmask 1024
    %431 = vst.msk [vmem:[%s8] sm:$0x3] %vm430, %v429
    // Predicated region
    $region42: #{tpu_custom_call.1} parent=1 // pred_check
      _
    $region43: #{tpu_custom_call.1} parent=1 // pred_check_branch
      %433 = sbr.rel (0) target = $region45
    $region44: #{tpu_custom_call.1} parent=1 // pred_region
      _
    $region45: #{tpu_custom_call.1} parent=1 // pred_fallthru
      _
    // Predicated region
    $region46: #{tpu_custom_call.1} parent=1 // pred_check
      _
    $region47: #{tpu_custom_call.1} parent=1 // pred_check_branch
      %435 = sbr.rel (0) target = $region49
    $region48: #{tpu_custom_call.1} parent=1 // pred_region
      _
    $region49: #{tpu_custom_call.1} parent=1 // pred_fallthru
      _
    %436 = vsyncpa [#allocation5], 1
    %437 = vsyncpa [#allocation7], 1

</llo_original>
